<compile_context>
chip_gen: v5e
topology: v5e:2x2
jax: 0.10.0
libtpu: 0.0.40
codegen_flags: <defaults>
</compile_context>

<pallas_src>
import jax
import jax.numpy as jnp
import numpy as np
from jax.experimental import pallas as pl
from jax.experimental.pallas import tpu as pltpu

C_IN = 3      # input channels (xyz face centers)
C_HID = 64    # hidden / output channels of both convs


def _spatial_descriptor_kernel(x_ref, w1_ref, t1_ref, w2_ref, t2_ref, o_ref):
    # x_ref : (1, 3, TN)   one (batch, N-tile) block, channels-first
    # w1_ref: (64, 3)      BN1-folded conv1 weight
    # t1_ref: (64, 1)      folded conv1 bias + BN1 shift
    # w2_ref: (64, 64)     BN2-folded conv2 weight
    # t2_ref: (64, 1)      folded conv2 bias + BN2 shift
    # o_ref : (1, 64, TN)
    x = x_ref[0]            # (3, TN)
    w1 = w1_ref[...]        # (64, 3)

    # Conv1d(3, 64, 1) + BN1: K=3, do it on the VPU as 3 broadcast MACs
    # (rank-1 outer products) instead of a degenerate MXU matmul.
    h = (w1[:, 0:1] * x[0:1, :]
         + w1[:, 1:2] * x[1:2, :]
         + w1[:, 2:3] * x[2:3, :]) + t1_ref[...]            # (64, TN)
    h = jnp.maximum(h, 0.0)                                 # ReLU

    # Conv1d(64, 64, 1) + BN2 on the MXU.
    h = jnp.dot(w2_ref[...], h, preferred_element_type=jnp.float32) + t2_ref[...]
    o_ref[0] = jnp.maximum(h, 0.0).astype(o_ref.dtype)      # ReLU


def _pick_n_tile(n):
    # Largest lane-aligned tile that divides N.  Largest candidate keeps the
    # double-buffered (in + out) VMEM footprint ~4.5 MiB — comfortably inside
    # v7x's 32 MiB scoped VMEM — while giving wide, lane-dense DMAs.
    for t in (8192, 4096, 2048, 1024, 512, 256, 128):
        if n % t == 0:
            return t
    # Fallback: single full-N block per batch element (needed when N is not a
    # multiple of 128; fine for small N).
    return n


@jax.jit
def spatial_descriptor(centers, params):
    """centers: (B, 3, N) float32 (PyTorch NCW).  Returns (B, 64, N) float32."""
    B, c_in, N = centers.shape
    assert c_in == C_IN

    w1, b1, g1, be1, rm1, rv1, w2, b2, g2, be2, rm2, rv2 = params
    eps = 1e-5

    # Fold eval-mode BatchNorm + conv bias into the conv weights:
    #   BN(conv(x)) = (W * s) @ x + ((b - rm) * s + beta),  s = gamma / sqrt(rv + eps)
    s1 = g1 / jnp.sqrt(rv1 + eps)
    w1f = (w1 * s1[:, None]).astype(jnp.float32)                      # (64, 3)
    t1f = ((b1 - rm1) * s1 + be1).reshape(C_HID, 1).astype(jnp.float32)

    s2 = g2 / jnp.sqrt(rv2 + eps)
    w2f = (w2 * s2[:, None]).astype(jnp.float32)                      # (64, 64)
    t2f = ((b2 - rm2) * s2 + be2).reshape(C_HID, 1).astype(jnp.float32)

    tn = _pick_n_tile(N)
    grid = (B, N // tn)

    const = lambda shape: pl.BlockSpec(shape, lambda b, n: (0,) * len(shape))

    # Advisory cost hint: low FLOP, bandwidth-dominated.
    flops = 2 * B * N * (C_IN * C_HID + C_HID * C_HID)
    bytes_accessed = 4 * (B * N * (C_IN + C_HID)
                          + C_HID * C_IN + C_HID * C_HID + 2 * C_HID)

    out = pl.pallas_call(
        _spatial_descriptor_kernel,
        out_shape=jax.ShapeDtypeStruct((B, C_HID, N), jnp.float32),
        grid=grid,
        in_specs=[
            pl.BlockSpec((1, C_IN, tn), lambda b, n: (b, 0, n)),      # x tile
            const((C_HID, C_IN)),                                     # w1f
            const((C_HID, 1)),                                        # t1f
            const((C_HID, C_HID)),                                    # w2f
            const((C_HID, 1)),                                        # t2f
        ],
        out_specs=pl.BlockSpec((1, C_HID, tn), lambda b, n: (b, 0, n)),
        compiler_params=pltpu.CompilerParams(
            dimension_semantics=("parallel", "parallel")),
        cost_estimate=pl.CostEstimate(flops=flops, transcendentals=0,
                                      bytes_accessed=bytes_accessed),
    )(centers.astype(jnp.float32), w1f, t1f, w2f, t2f)

    return out  # (B, 64, N), already NCW — no wrapper transpose needed


def init_params(key):
    """Deterministic synthetic parameters matching the PyTorch module shapes."""
    ks = jax.random.split(key, 8)
    w1 = jax.random.normal(ks[0], (C_HID, C_IN), jnp.float32) * 0.1   # Conv1d(3,64,1).weight (k=1 squeezed)
    b1 = jax.random.normal(ks[1], (C_HID,), jnp.float32) * 0.1
    g1 = 1.0 + 0.1 * jax.random.normal(ks[2], (C_HID,), jnp.float32)  # BN gamma
    be1 = 0.1 * jax.random.normal(ks[3], (C_HID,), jnp.float32)       # BN beta
    rm1 = 0.1 * jax.random.normal(ks[2], (C_HID,), jnp.float32)       # BN running_mean
    rv1 = jnp.abs(1.0 + 0.1 * jax.random.normal(ks[3], (C_HID,), jnp.float32))  # running_var

    w2 = jax.random.normal(ks[4], (C_HID, C_HID), jnp.float32) * 0.1
    b2 = jax.random.normal(ks[5], (C_HID,), jnp.float32) * 0.1
    g2 = 1.0 + 0.1 * jax.random.normal(ks[6], (C_HID,), jnp.float32)
    be2 = 0.1 * jax.random.normal(ks[7], (C_HID,), jnp.float32)
    rm2 = 0.1 * jax.random.normal(ks[6], (C_HID,), jnp.float32)
    rv2 = jnp.abs(1.0 + 0.1 * jax.random.normal(ks[7], (C_HID,), jnp.float32))
    return (w1, b1, g1, be1, rm1, rv1, w2, b2, g2, be2, rm2, rv2)


def _reference(centers, params):
    """Pure-JAX reference (mirrors PyTorch eval-mode forward)."""
    w1, b1, g1, be1, rm1, rv1, w2, b2, g2, be2, rm2, rv2 = params
    eps = 1e-5
    h = jnp.einsum("oc,bcn->bon", w1, centers) + b1[None, :, None]
    h = (h - rm1[None, :, None]) / jnp.sqrt(rv1 + eps)[None, :, None]
    h = h * g1[None, :, None] + be1[None, :, None]
    h = jnp.maximum(h, 0.0)
    h = jnp.einsum("oc,bcn->bon", w2, h) + b2[None, :, None]
    h = (h - rm2[None, :, None]) / jnp.sqrt(rv2 + eps)[None, :, None]
    h = h * g2[None, :, None] + be2[None, :, None]
    return jnp.maximum(h, 0.0)


if __name__ == "__main__":
    key = jax.random.PRNGKey(0)
    k_in, k_p = jax.random.split(key)

    B, N = 2, 384   # small, but exercises the multi-tile grid (N_TILE = 128, 3 tiles)
    centers = jax.random.normal(k_in, (B, C_IN, N), jnp.float32)  # (batch, 3, n_faces)
    params = init_params(k_p)

    out = spatial_descriptor(centers, params)
    out = jax.block_until_ready(out)

    ref = _reference(centers, params)
    assert out.shape == (B, C_HID, N), out.shape
    np.testing.assert_allclose(np.asarray(out), np.asarray(ref), rtol=1e-5, atol=1e-5)

    print("KERNEL_OK")
</pallas_src>

<mosaic_0001>
module attributes {stable_mosaic.version = 11 : i64} {
  func.func @_spatial_descriptor_kernel(%arg0: i32, %arg1: i32, %arg2: memref<1x3x128xf32, #tpu.memory_space<vmem>>, %arg3: memref<64x3xf32, #tpu.memory_space<vmem>>, %arg4: memref<64x1xf32, #tpu.memory_space<vmem>>, %arg5: memref<64x64xf32, #tpu.memory_space<vmem>>, %arg6: memref<64x1xf32, #tpu.memory_space<vmem>>, %arg7: memref<1x64x128xf32, #tpu.memory_space<vmem>>) attributes {dimension_semantics = [#tpu.dimension_semantics<parallel>, #tpu.dimension_semantics<parallel>], iteration_bounds = array<i64: 2, 3>, scalar_prefetch = 0 : i64, scratch_operands = 0 : i64, tpu.core_type = #tpu.core_type<tc>, window_params = [{transform_indices = @transform_0, window_bounds = array<i64: 1, 3, 128>}, {pipeline_mode = #tpu.pipeline_mode<synchronous>, transform_indices = @transform_1, window_bounds = array<i64: 64, 3>}, {pipeline_mode = #tpu.pipeline_mode<synchronous>, transform_indices = @transform_2, window_bounds = array<i64: 64, 1>}, {pipeline_mode = #tpu.pipeline_mode<synchronous>, transform_indices = @transform_3, window_bounds = array<i64: 64, 64>}, {pipeline_mode = #tpu.pipeline_mode<synchronous>, transform_indices = @transform_4, window_bounds = array<i64: 64, 1>}, {transform_indices = @transform_5, window_bounds = array<i64: 1, 64, 128>}]} {
    %c0 = arith.constant 0 : index
    %c0_0 = arith.constant 0 : index
    %c0_1 = arith.constant 0 : index
    %0 = vector.load %arg2[%c0, %c0_0, %c0_1] : memref<1x3x128xf32, #tpu.memory_space<vmem>>, vector<1x3x128xf32>
    %1 = vector.shape_cast %0 : vector<1x3x128xf32> to vector<3x128xf32>
    %c0_2 = arith.constant 0 : index
    %c0_3 = arith.constant 0 : index
    %2 = vector.load %arg3[%c0_2, %c0_3] : memref<64x3xf32, #tpu.memory_space<vmem>>, vector<64x3xf32>
    %3 = vector.extract_strided_slice %2 {offsets = [0, 0], sizes = [64, 1], strides = [1, 1]} : vector<64x3xf32> to vector<64x1xf32>
    %4 = vector.extract_strided_slice %1 {offsets = [0, 0], sizes = [1, 128], strides = [1, 1]} : vector<3x128xf32> to vector<1x128xf32>
    %5 = vector.broadcast %3 : vector<64x1xf32> to vector<64x128xf32>
    %6 = vector.broadcast %4 : vector<1x128xf32> to vector<64x128xf32>
    %7 = arith.mulf %5, %6 : vector<64x128xf32>
    %8 = vector.extract_strided_slice %2 {offsets = [0, 1], sizes = [64, 1], strides = [1, 1]} : vector<64x3xf32> to vector<64x1xf32>
    %9 = vector.extract_strided_slice %1 {offsets = [1, 0], sizes = [1, 128], strides = [1, 1]} : vector<3x128xf32> to vector<1x128xf32>
    %10 = vector.broadcast %8 : vector<64x1xf32> to vector<64x128xf32>
    %11 = vector.broadcast %9 : vector<1x128xf32> to vector<64x128xf32>
    %12 = arith.mulf %10, %11 : vector<64x128xf32>
    %13 = arith.addf %7, %12 : vector<64x128xf32>
    %14 = vector.extract_strided_slice %2 {offsets = [0, 2], sizes = [64, 1], strides = [1, 1]} : vector<64x3xf32> to vector<64x1xf32>
    %15 = vector.extract_strided_slice %1 {offsets = [2, 0], sizes = [1, 128], strides = [1, 1]} : vector<3x128xf32> to vector<1x128xf32>
    %16 = vector.broadcast %14 : vector<64x1xf32> to vector<64x128xf32>
    %17 = vector.broadcast %15 : vector<1x128xf32> to vector<64x128xf32>
    %18 = arith.mulf %16, %17 : vector<64x128xf32>
    %19 = arith.addf %13, %18 : vector<64x128xf32>
    %c0_4 = arith.constant 0 : index
    %c0_5 = arith.constant 0 : index
    %20 = vector.load %arg4[%c0_4, %c0_5] : memref<64x1xf32, #tpu.memory_space<vmem>>, vector<64x1xf32>
    %21 = vector.broadcast %20 : vector<64x1xf32> to vector<64x128xf32>
    %22 = arith.addf %19, %21 : vector<64x128xf32>
    %cst = arith.constant 0.000000e+00 : f32
    %23 = vector.broadcast %cst : f32 to vector<64x128xf32>
    %24 = arith.maximumf %22, %23 : vector<64x128xf32>
    %c0_6 = arith.constant 0 : index
    %c0_7 = arith.constant 0 : index
    %25 = vector.load %arg5[%c0_6, %c0_7] : memref<64x64xf32, #tpu.memory_space<vmem>>, vector<64x64xf32>
    %cst_8 = arith.constant dense<0.000000e+00> : vector<64x128xf32>
    %26 = tpu.matmul %25, %24, %cst_8 {dimension_numbers = #tpu.dot_dimension_numbers<[1], [0], [0], [1], [0, 0, 1, 1], [], []>} : vector<64x64xf32>, vector<64x128xf32>, vector<64x128xf32> -> vector<64x128xf32>
    %c0_9 = arith.constant 0 : index
    %c0_10 = arith.constant 0 : index
    %27 = vector.load %arg6[%c0_9, %c0_10] : memref<64x1xf32, #tpu.memory_space<vmem>>, vector<64x1xf32>
    %28 = vector.broadcast %27 : vector<64x1xf32> to vector<64x128xf32>
    %29 = arith.addf %26, %28 : vector<64x128xf32>
    %cst_11 = arith.constant 0.000000e+00 : f32
    %30 = vector.broadcast %cst_11 : f32 to vector<64x128xf32>
    %31 = arith.maximumf %29, %30 : vector<64x128xf32>
    %c0_12 = arith.constant 0 : index
    %c0_13 = arith.constant 0 : index
    %c0_14 = arith.constant 0 : index
    %32 = vector.load %arg7[%c0_12, %c0_13, %c0_14] : memref<1x64x128xf32, #tpu.memory_space<vmem>>, vector<1x64x128xf32>
    %33 = vector.shape_cast %32 : vector<1x64x128xf32> to vector<64x128xf32>
    %34 = vector.shape_cast %31 : vector<64x128xf32> to vector<1x64x128xf32>
    tpu.vector_store %arg7[%c0_12, %c0_13, %c0_14], %34 {strides = array<i32>} : memref<1x64x128xf32, #tpu.memory_space<vmem>>, vector<1x64x128xf32>,
    return
  }
  func.func @transform_0(%arg0: i32, %arg1: i32) -> (i32, i32, i32) {
    %c0_i32 = arith.constant 0 : i32
    %c0_i32_0 = arith.constant 0 : i32
    return %arg0, %c0_i32, %arg1 : i32, i32, i32
  }
  func.func @transform_1(%arg0: i32, %arg1: i32) -> (i32, i32) {
    %c0_i32 = arith.constant 0 : i32
    %c0_i32_0 = arith.constant 0 : i32
    %c0_i32_1 = arith.constant 0 : i32
    return %c0_i32, %c0_i32_0 : i32, i32
  }
  func.func @transform_2(%arg0: i32, %arg1: i32) -> (i32, i32) {
    %c0_i32 = arith.constant 0 : i32
    %c0_i32_0 = arith.constant 0 : i32
    %c0_i32_1 = arith.constant 0 : i32
    return %c0_i32, %c0_i32_0 : i32, i32
  }
  func.func @transform_3(%arg0: i32, %arg1: i32) -> (i32, i32) {
    %c0_i32 = arith.constant 0 : i32
    %c0_i32_0 = arith.constant 0 : i32
    %c0_i32_1 = arith.constant 0 : i32
    return %c0_i32, %c0_i32_0 : i32, i32
  }
  func.func @transform_4(%arg0: i32, %arg1: i32) -> (i32, i32) {
    %c0_i32 = arith.constant 0 : i32
    %c0_i32_0 = arith.constant 0 : i32
    %c0_i32_1 = arith.constant 0 : i32
    return %c0_i32, %c0_i32_0 : i32, i32
  }
  func.func @transform_5(%arg0: i32, %arg1: i32) -> (i32, i32, i32) {
    %c0_i32 = arith.constant 0 : i32
    %c0_i32_0 = arith.constant 0 : i32
    return %arg0, %c0_i32, %arg1 : i32, i32, i32
  }
}

</mosaic_0001>

<llo_original>
// kernel: spatial_descriptor.1
$region0: #{spatial_descriptor.1}
  #allocation0 [shape = 'u32[]', space=smem, size = 0x4, offset = 0x4, fixed_abs, tag = 'smem constant byte address 0x4 - core index']
  #allocation1 [shape = 'u32[72,128]{1,0:T(1,128)}', space=vmem, size = 0x9000, scoped, tag = 'internal scratch']
  %s0 = inlined_call_operand.vmem [shape: f32[2,3,384], index: 0, kind: input, shape index: {}]
  %s1 = inlined_call_operand.vmem [shape: f32[64,3], index: 1, kind: input, shape index: {}]
  %s2 = inlined_call_operand.vmem [shape: f32[64,1], index: 2, kind: input, shape index: {}]
  %s3 = inlined_call_operand.vmem [shape: f32[64,64], index: 3, kind: input, shape index: {}]
  %s4 = inlined_call_operand.vmem [shape: f32[64,1], index: 4, kind: input, shape index: {}]
  %s5 = inlined_call_operand.hbm [shape: f32[2,64,384], index: 5, kind: output, shape index: {}]
  %s6 = sld [smem:[#allocation0]]
  $region53: #{spatial_descriptor.1} parent=0
    _
  %s8 = ssub.s32 1, %s6
  %s9 = scalar_select 0, %s8, %s6
  $region1: #{spatial_descriptor.1} parent=0
    #allocation2 [shape = 'u8[65536]{0}', space=vmem, size = 0x10000, scoped, tag = 'output window, operand 0']
    #allocation3 [shape = 's32[2]{0}', space=sflag, size = 0x8, scoped, tag = 'scoped memory for spatial_descriptor.1']
    %10 = vsyncpa [#allocation3], 0
    %s11 = scalar_lea.sflag [#allocation3], 1
    %12 = vsyncpa %s11, 0
    loop: start=0, step=1, limit=8
    $region2: #{spatial_descriptor.1} parent=1 // loop_pre_header
      _
    $region3: #{spatial_descriptor.1} parent=1 // loop_header
      %s14 = sphi 0, %s18
      %p15 = scmp.ge.s32.totalorder %s14, 8
      %s21 = sphi 0, %s33
      %s22 = sphi 0, %s29
      %s23 = sphi 0, %s21
      %s24 = sphi 0, %s22
      %s25 = sphi 0, %s23
      %s26 = sphi 0, %s24
      %s38 = sphi 0, %s40
      %s41 = sphi 0, %s38
      %s42 = sphi 0, %s41
      %s58 = sphi 0, %s42
      %s62 = sphi 0, %s62
      %s64 = sphi 0, %s62
      %s65 = sphi 0, %s64
      %s79 = sphi 0, %s65
      %s83 = sphi 0, %s83
      %s85 = sphi 0, %s83
      %s86 = sphi 0, %s85
      %s100 = sphi 0, %s86
      %s104 = sphi 0, %s104
      %s106 = sphi 0, %s104
      %s107 = sphi 0, %s106
      %s121 = sphi 0, %s107
      %s125 = sphi 0, %s125
      %s127 = sphi 0, %s125
      %s128 = sphi 0, %s127
      %s142 = sphi 0, %s128
      %s150 = sphi 0, %s152
      %s153 = sphi 0, %s150
      %s154 = sphi 0, %s153
      %s170 = sphi 0, %s154
    $region4: #{spatial_descriptor.1} parent=1 // loop_header_branch
      %17 = sbr.rel (%p15) target = $region8
    $region5: #{spatial_descriptor.1} parent=1 // loop_body
      %s19 = ssub.s32 %s14, 1
      %s20 = ssub.s32 %s14, 2
      %s27 = sadd.s32 1, %s22
      %p28 = scmp.ge.s32.totalorder %s27, 3
      %s29 = scalar_select %p28, 0, %s27
      %s30 = sadd.s32 1, %s21
      %s31 = scalar_select %p28, %s30, %s21
      %p32 = scmp.ge.s32.totalorder %s31, 2
      %s33 = scalar_select %p32, 0, %s31
      %s34 = ssub.s32 %s21, %s33
      %s35 = ssub.s32 %s22, %s29
      %s36 = sor.u32 %s34, %s35
      %p37 = scmp.eq.s32.totalorder %s36, 0
      %s39 = sadd.s32 %s38, 1
      %s40 = scalar_select %p37, %s38, %s39
      %p43 = pneg %p37
      %p44 = scmp.eq.s32.totalorder %s14, 5
      %p45 = por %p43, %p44
      %p46 = scmp.ne.s32.totalorder %s38, %s41
      %p47 = scmp.eq.s32.totalorder %s14, 0
      %p48 = por %p46, %p47
      %p49 = scmp.ne.s32.totalorder %s38, %s41
      %p50 = scmp.eq.s32.totalorder %s19, 5
      %p51 = por %p49, %p50
      %p52 = scmp.ne.s32.totalorder %s41, %s42
      %p53 = scmp.eq.s32.totalorder %s19, 0
      %p54 = por %p52, %p53
      %p55 = scmp.ne.s32.totalorder %s41, %s42
      %p56 = scmp.eq.s32.totalorder %s20, 5
      %p57 = por %p55, %p56
      %p59 = scmp.ne.s32.totalorder %s42, %s58
      %p60 = scmp.eq.s32.totalorder %s20, 0
      %p61 = por %p59, %p60
      %s63 = sadd.s32 %s62, 1
      %p66 = scmp.eq.s32.totalorder %s14, 5
      %p67 = scmp.ne.s32.totalorder %s62, %s64
      %p68 = scmp.eq.s32.totalorder %s14, 0
      %p69 = por %p67, %p68
      %p70 = scmp.ne.s32.totalorder %s62, %s64
      %p71 = scmp.eq.s32.totalorder %s19, 5
      %p72 = por %p70, %p71
      %p73 = scmp.ne.s32.totalorder %s64, %s65
      %p74 = scmp.eq.s32.totalorder %s19, 0
      %p75 = por %p73, %p74
      %p76 = scmp.ne.s32.totalorder %s64, %s65
      %p77 = scmp.eq.s32.totalorder %s20, 5
      %p78 = por %p76, %p77
      %p80 = scmp.ne.s32.totalorder %s65, %s79
      %p81 = scmp.eq.s32.totalorder %s20, 0
      %p82 = por %p80, %p81
      %s84 = sadd.s32 %s83, 1
      %p87 = scmp.eq.s32.totalorder %s14, 5
      %p88 = scmp.ne.s32.totalorder %s83, %s85
      %p89 = scmp.eq.s32.totalorder %s14, 0
      %p90 = por %p88, %p89
      %p91 = scmp.ne.s32.totalorder %s83, %s85
      %p92 = scmp.eq.s32.totalorder %s19, 5
      %p93 = por %p91, %p92
      %p94 = scmp.ne.s32.totalorder %s85, %s86
      %p95 = scmp.eq.s32.totalorder %s19, 0
      %p96 = por %p94, %p95
      %p97 = scmp.ne.s32.totalorder %s85, %s86
      %p98 = scmp.eq.s32.totalorder %s20, 5
      %p99 = por %p97, %p98
      %p101 = scmp.ne.s32.totalorder %s86, %s100
      %p102 = scmp.eq.s32.totalorder %s20, 0
      %p103 = por %p101, %p102
      %s105 = sadd.s32 %s104, 1
      %p108 = scmp.eq.s32.totalorder %s14, 5
      %p109 = scmp.ne.s32.totalorder %s104, %s106
      %p110 = scmp.eq.s32.totalorder %s14, 0
      %p111 = por %p109, %p110
      %p112 = scmp.ne.s32.totalorder %s104, %s106
      %p113 = scmp.eq.s32.totalorder %s19, 5
      %p114 = por %p112, %p113
      %p115 = scmp.ne.s32.totalorder %s106, %s107
      %p116 = scmp.eq.s32.totalorder %s19, 0
      %p117 = por %p115, %p116
      %p118 = scmp.ne.s32.totalorder %s106, %s107
      %p119 = scmp.eq.s32.totalorder %s20, 5
      %p120 = por %p118, %p119
      %p122 = scmp.ne.s32.totalorder %s107, %s121
      %p123 = scmp.eq.s32.totalorder %s20, 0
      %p124 = por %p122, %p123
      %s126 = sadd.s32 %s125, 1
      %p129 = scmp.eq.s32.totalorder %s14, 5
      %p130 = scmp.ne.s32.totalorder %s125, %s127
      %p131 = scmp.eq.s32.totalorder %s14, 0
      %p132 = por %p130, %p131
      %p133 = scmp.ne.s32.totalorder %s125, %s127
      %p134 = scmp.eq.s32.totalorder %s19, 5
      %p135 = por %p133, %p134
      %p136 = scmp.ne.s32.totalorder %s127, %s128
      %p137 = scmp.eq.s32.totalorder %s19, 0
      %p138 = por %p136, %p137
      %p139 = scmp.ne.s32.totalorder %s127, %s128
      %p140 = scmp.eq.s32.totalorder %s20, 5
      %p141 = por %p139, %p140
      %p143 = scmp.ne.s32.totalorder %s128, %s142
      %p144 = scmp.eq.s32.totalorder %s20, 0
      %p145 = por %p143, %p144
      %s146 = ssub.s32 %s21, %s33
      %s147 = ssub.s32 %s22, %s29
      %s148 = sor.u32 %s146, %s147
      %p149 = scmp.eq.s32.totalorder %s148, 0
      %s151 = sadd.s32 %s150, 1
      %s152 = scalar_select %p149, %s150, %s151
      %p155 = pneg %p149
      %p156 = scmp.eq.s32.totalorder %s14, 5
      %p157 = por %p155, %p156
      %p158 = scmp.ne.s32.totalorder %s150, %s153
      %p159 = scmp.eq.s32.totalorder %s14, 0
      %p160 = por %p158, %p159
      %p161 = scmp.ne.s32.totalorder %s150, %s153
      %p162 = scmp.eq.s32.totalorder %s19, 5
      %p163 = por %p161, %p162
      %p164 = scmp.ne.s32.totalorder %s153, %s154
      %p165 = scmp.eq.s32.totalorder %s19, 0
      %p166 = por %p164, %p165
      %p167 = scmp.ne.s32.totalorder %s153, %s154
      %p168 = scmp.eq.s32.totalorder %s20, 5
      %p169 = por %p167, %p168
      %p171 = scmp.ne.s32.totalorder %s154, %s170
      %p172 = scmp.eq.s32.totalorder %s20, 0
      %p173 = por %p171, %p172
      %p174 = scmp.le.s32.totalorder 1, %s14
      %p175 = scmp.lt.s32.totalorder %s14, 7
      %p176 = pnand %p174, %p175
      %p177 = pneg %p176
      // Predicated region
      $region9: #{spatial_descriptor.1} parent=5 // pred_check
        _
      $region10: #{spatial_descriptor.1} parent=5 // pred_check_branch
        %179 = sbr.rel (%p176) target = $region12
      $region11: #{spatial_descriptor.1} parent=5 // pred_region
        %s180 = ssub.s32 %s14, 1
        // Predicated region
        $region13: #{spatial_descriptor.1} parent=11 // pred_check
          %p181 = pneg %p75
        $region14: #{spatial_descriptor.1} parent=11 // pred_check_branch
          %183 = sbr.rel (%p181) target = $region16
        $region15: #{spatial_descriptor.1} parent=11 // pred_region
          _
        $region16: #{spatial_descriptor.1} parent=11 // pred_fallthru
          _
        // Predicated region
        $region17: #{spatial_descriptor.1} parent=11 // pred_check
          %p184 = pneg %p96
        $region18: #{spatial_descriptor.1} parent=11 // pred_check_branch
          %186 = sbr.rel (%p184) target = $region20
        $region19: #{spatial_descriptor.1} parent=11 // pred_region
          _
        $region20: #{spatial_descriptor.1} parent=11 // pred_fallthru
          _
        // Predicated region
        $region21: #{spatial_descriptor.1} parent=11 // pred_check
          %p187 = pneg %p117
        $region22: #{spatial_descriptor.1} parent=11 // pred_check_branch
          %189 = sbr.rel (%p187) target = $region24
        $region23: #{spatial_descriptor.1} parent=11 // pred_region
          _
        $region24: #{spatial_descriptor.1} parent=11 // pred_fallthru
          _
        // Predicated region
        $region25: #{spatial_descriptor.1} parent=11 // pred_check
          %p190 = pneg %p138
        $region26: #{spatial_descriptor.1} parent=11 // pred_check_branch
          %192 = sbr.rel (%p190) target = $region28
        $region27: #{spatial_descriptor.1} parent=11 // pred_region
          _
        $region28: #{spatial_descriptor.1} parent=11 // pred_fallthru
          _
      $region12: #{spatial_descriptor.1} parent=5 // pred_fallthru
        _
      %p193 = scmp.lt.s32.totalorder %s14, 6
      // Predicated region
      $region29: #{spatial_descriptor.1} parent=5 // pred_check
        %p194 = pneg %p193
      $region30: #{spatial_descriptor.1} parent=5 // pred_check_branch
        %196 = sbr.rel (%p194) target = $region32
      $region31: #{spatial_descriptor.1} parent=5 // pred_region
        // Predicated region
        $region33: #{spatial_descriptor.1} parent=31 // pred_check
          %p197 = pneg %p48
        $region34: #{spatial_descriptor.1} parent=31 // pred_check_branch
          %199 = sbr.rel (%p197) target = $region36
        $region35: #{spatial_descriptor.1} parent=31 // pred_region
          %p200 = scmp.lt.s32.totalorder %s21, 1
          %s201 = scalar_select %p200, %s21, 1
          %p202 = scmp.lt.s32.totalorder %s22, 2
          %s203 = scalar_select %p202, %s22, 2
          %s204 = smul.addr %s201, 3
          %s205 = sadd.s32 %s203, %s204
          %s206 = smul.addr %s205, 4
          %s207 = scalar_lea.vmem %s0, %s206
        $region36: #{spatial_descriptor.1} parent=31 // pred_fallthru
          _
      $region32: #{spatial_descriptor.1} parent=5 // pred_fallthru
        _
      %p208 = scmp.le.s32.totalorder 1, %s14
      %p209 = scmp.lt.s32.totalorder %s14, 7
      %p210 = pnand %p208, %p209
      %p211 = pneg %p210
      // Predicated region
      $region37: #{spatial_descriptor.1} parent=5 // pred_check
        _
      $region38: #{spatial_descriptor.1} parent=5 // pred_check_branch
        %213 = sbr.rel (%p210) target = $region40
      $region39: #{spatial_descriptor.1} parent=5 // pred_region
        %s214 = ssub.s32 %s14, 1
        %p215 = scmp.lt.s32.totalorder %s23, 1
        %s216 = scalar_select %p215, %s23, 1
        %p217 = scmp.lt.s32.totalorder %s24, 2
        %s218 = scalar_select %p217, %s24, 2
        %s219 = smul.addr %s216, 3
        %s220 = sadd.s32 %s218, %s219
        %s221 = smul.addr %s220, 4
        %s222 = scalar_lea.vmem %s0, %s221
        %p223 = pneg %p54
        %p224 = pneg %p51
        %p225 = pneg %p75
        %p226 = pneg %p72
        %p227 = pneg %p96
        %p228 = pneg %p93
        %p229 = pneg %p117
        %p230 = pneg %p114
        %p231 = pneg %p138
        %p232 = pneg %p135
        %p233 = pneg %p166
        %p234 = pneg %p163
        %s235 = sand.u32 %s153, 1
        %s236 = scalar_lea.sflag [#allocation3], %s235
        %s237 = sand.u32 %s153, 1
        %s238 = smul.addr %s237, 64
        %s239 = scalar_lea.vmem [#allocation2], %s238
        %p240 = scmp.lt.s32.totalorder %s23, 1
        %s241 = scalar_select %p240, %s23, 1
        %p242 = scmp.lt.s32.totalorder %s24, 2
        %s243 = scalar_select %p242, %s24, 2
        %s244 = smul.addr %s241, 3
        %s245 = sadd.s32 %s243, %s244
        %s246 = smul.addr %s245, 4
        %s247 = scalar_lea.vmem %s0, %s246
        %v248 = vld [vmem:[%s247] sm:$0x7]
        %v249 = vld [vmem:[%s1] sm:$0xff]
        %v250 = vld [vmem:[%s1 + $0x8] sm:$0xff]
        %v251 = vld [vmem:[%s1 + $0x10] sm:$0xff]
        %v252 = vld [vmem:[%s1 + $0x18] sm:$0xff]
        %v253 = vld [vmem:[%s1 + $0x20] sm:$0xff]
        %v254 = vld [vmem:[%s1 + $0x28] sm:$0xff]
        %v255 = vld [vmem:[%s1 + $0x30] sm:$0xff]
        %v256 = vld [vmem:[%s1 + $0x38] sm:$0xff]
        %258 = vset.pattern.permute.xlu0 0
        %259 = vperm.xlu0 %258, %v249
        %v260 = vpop.permute.xlu0 %259
        %263 = vset.pattern.permute.xlu0 0
        %264 = vperm.xlu0 %263, %v250
        %v265 = vpop.permute.xlu0 %264
        %268 = vset.pattern.permute.xlu0 0
        %269 = vperm.xlu0 %268, %v251
        %v270 = vpop.permute.xlu0 %269
        %273 = vset.pattern.permute.xlu0 0
        %274 = vperm.xlu0 %273, %v252
        %v275 = vpop.permute.xlu0 %274
        %278 = vset.pattern.permute.xlu0 0
        %279 = vperm.xlu0 %278, %v253
        %v280 = vpop.permute.xlu0 %279
        %283 = vset.pattern.permute.xlu0 0
        %284 = vperm.xlu0 %283, %v254
        %v285 = vpop.permute.xlu0 %284
        %288 = vset.pattern.permute.xlu0 0
        %289 = vperm.xlu0 %288, %v255
        %v290 = vpop.permute.xlu0 %289
        %293 = vset.pattern.permute.xlu0 0
        %294 = vperm.xlu0 %293, %v256
        %v295 = vpop.permute.xlu0 %294
        %v297 = vperm.slane %v248, 0
        %v298 = vmul.f32 %v260, %v297
        %v299 = vmul.f32 %v265, %v297
        %v300 = vmul.f32 %v270, %v297
        %v301 = vmul.f32 %v275, %v297
        %v302 = vmul.f32 %v280, %v297
        %v303 = vmul.f32 %v285, %v297
        %v304 = vmul.f32 %v290, %v297
        %v305 = vmul.f32 %v295, %v297
        %306 = vset.pattern.permute.xlu0 1
        %307 = vperm.xlu0 %306, %v249
        %v308 = vpop.permute.xlu0 %307
        %310 = vset.pattern.permute.xlu0 1
        %311 = vperm.xlu0 %310, %v250
        %v312 = vpop.permute.xlu0 %311
        %314 = vset.pattern.permute.xlu0 1
        %315 = vperm.xlu0 %314, %v251
        %v316 = vpop.permute.xlu0 %315
        %318 = vset.pattern.permute.xlu0 1
        %319 = vperm.xlu0 %318, %v252
        %v320 = vpop.permute.xlu0 %319
        %322 = vset.pattern.permute.xlu0 1
        %323 = vperm.xlu0 %322, %v253
        %v324 = vpop.permute.xlu0 %323
        %326 = vset.pattern.permute.xlu0 1
        %327 = vperm.xlu0 %326, %v254
        %v328 = vpop.permute.xlu0 %327
        %330 = vset.pattern.permute.xlu0 1
        %331 = vperm.xlu0 %330, %v255
        %v332 = vpop.permute.xlu0 %331
        %334 = vset.pattern.permute.xlu0 1
        %335 = vperm.xlu0 %334, %v256
        %v336 = vpop.permute.xlu0 %335
        %v338 = vperm.slane %v248, 1
        %v339 = vmul.f32 %v308, %v338
        %v340 = vmul.f32 %v312, %v338
        %v341 = vmul.f32 %v316, %v338
        %v342 = vmul.f32 %v320, %v338
        %v343 = vmul.f32 %v324, %v338
        %v344 = vmul.f32 %v328, %v338
        %v345 = vmul.f32 %v332, %v338
        %v346 = vmul.f32 %v336, %v338
        %v347 = vadd.f32 %v298, %v339
        %v348 = vadd.f32 %v299, %v340
        %v349 = vadd.f32 %v300, %v341
        %v350 = vadd.f32 %v301, %v342
        %v351 = vadd.f32 %v302, %v343
        %v352 = vadd.f32 %v303, %v344
        %v353 = vadd.f32 %v304, %v345
        %v354 = vadd.f32 %v305, %v346
        %355 = vset.pattern.permute.xlu0 2
        %356 = vperm.xlu0 %355, %v249
        %v357 = vpop.permute.xlu0 %356
        %359 = vset.pattern.permute.xlu0 2
        %360 = vperm.xlu0 %359, %v250
        %v361 = vpop.permute.xlu0 %360
        %363 = vset.pattern.permute.xlu0 2
        %364 = vperm.xlu0 %363, %v251
        %v365 = vpop.permute.xlu0 %364
        %367 = vset.pattern.permute.xlu0 2
        %368 = vperm.xlu0 %367, %v252
        %v369 = vpop.permute.xlu0 %368
        %371 = vset.pattern.permute.xlu0 2
        %372 = vperm.xlu0 %371, %v253
        %v373 = vpop.permute.xlu0 %372
        %375 = vset.pattern.permute.xlu0 2
        %376 = vperm.xlu0 %375, %v254
        %v377 = vpop.permute.xlu0 %376
        %379 = vset.pattern.permute.xlu0 2
        %380 = vperm.xlu0 %379, %v255
        %v381 = vpop.permute.xlu0 %380
        %383 = vset.pattern.permute.xlu0 2
        %384 = vperm.xlu0 %383, %v256
        %v385 = vpop.permute.xlu0 %384
        %v387 = vperm.slane %v248, 2
        %v388 = vmul.f32 %v357, %v387
        %v389 = vmul.f32 %v361, %v387
        %v390 = vmul.f32 %v365, %v387
        %v391 = vmul.f32 %v369, %v387
        %v392 = vmul.f32 %v373, %v387
        %v393 = vmul.f32 %v377, %v387
        %v394 = vmul.f32 %v381, %v387
        %v395 = vmul.f32 %v385, %v387
        %v396 = vadd.f32 %v347, %v388
        %v397 = vadd.f32 %v348, %v389
        %v398 = vadd.f32 %v349, %v390
        %v399 = vadd.f32 %v350, %v391
        %v400 = vadd.f32 %v351, %v392
        %v401 = vadd.f32 %v352, %v393
        %v402 = vadd.f32 %v353, %v394
        %v403 = vadd.f32 %v354, %v395
        %v404 = vld [vmem:[%s2] sm:$0xff]
        %v405 = vld [vmem:[%s2 + $0x8] sm:$0xff]
        %v406 = vld [vmem:[%s2 + $0x10] sm:$0xff]
        %v407 = vld [vmem:[%s2 + $0x18] sm:$0xff]
        %v408 = vld [vmem:[%s2 + $0x20] sm:$0xff]
        %v409 = vld [vmem:[%s2 + $0x28] sm:$0xff]
        %v410 = vld [vmem:[%s2 + $0x30] sm:$0xff]
        %v411 = vld [vmem:[%s2 + $0x38] sm:$0xff]
        %413 = vset.pattern.permute.xlu0 0
        %414 = vperm.xlu0 %413, %v404
        %v415 = vpop.permute.xlu0 %414
        %418 = vset.pattern.permute.xlu0 0
        %419 = vperm.xlu0 %418, %v405
        %v420 = vpop.permute.xlu0 %419
        %423 = vset.pattern.permute.xlu0 0
        %424 = vperm.xlu0 %423, %v406
        %v425 = vpop.permute.xlu0 %424
        %428 = vset.pattern.permute.xlu0 0
        %429 = vperm.xlu0 %428, %v407
        %v430 = vpop.permute.xlu0 %429
        %433 = vset.pattern.permute.xlu0 0
        %434 = vperm.xlu0 %433, %v408
        %v435 = vpop.permute.xlu0 %434
        %438 = vset.pattern.permute.xlu0 0
        %439 = vperm.xlu0 %438, %v409
        %v440 = vpop.permute.xlu0 %439
        %443 = vset.pattern.permute.xlu0 0
        %444 = vperm.xlu0 %443, %v410
        %v445 = vpop.permute.xlu0 %444
        %448 = vset.pattern.permute.xlu0 0
        %449 = vperm.xlu0 %448, %v411
        %v450 = vpop.permute.xlu0 %449
        %v452 = vadd.f32 %v396, %v415
        %v453 = vadd.f32 %v397, %v420
        %v454 = vadd.f32 %v398, %v425
        %v455 = vadd.f32 %v399, %v430
        %v456 = vadd.f32 %v400, %v435
        %v457 = vadd.f32 %v401, %v440
        %v458 = vadd.f32 %v402, %v445
        %v459 = vadd.f32 %v403, %v450
        %v460 = vmax.f32 %v452, 0.0
        %v461 = vmax.f32 %v453, 0.0
        %v462 = vmax.f32 %v454, 0.0
        %v463 = vmax.f32 %v455, 0.0
        %v464 = vmax.f32 %v456, 0.0
        %v465 = vmax.f32 %v457, 0.0
        %v466 = vmax.f32 %v458, 0.0
        %v467 = vmax.f32 %v459, 0.0
        %v468 = vld [vmem:[%s3] sm:$0xff]
        %v469 = vld [vmem:[%s3 + $0x8] sm:$0xff]
        %v470 = vld [vmem:[%s3 + $0x10] sm:$0xff]
        %v471 = vld [vmem:[%s3 + $0x18] sm:$0xff]
        %v472 = vld [vmem:[%s3 + $0x20] sm:$0xff]
        %v473 = vld [vmem:[%s3 + $0x28] sm:$0xff]
        %v474 = vld [vmem:[%s3 + $0x30] sm:$0xff]
        %v475 = vld [vmem:[%s3 + $0x38] sm:$0xff]
        %v476 = vld [vmem:[%s4] sm:$0xff]
        %v477 = vld [vmem:[%s4 + $0x8] sm:$0xff]
        %v478 = vld [vmem:[%s4 + $0x10] sm:$0xff]
        %v479 = vld [vmem:[%s4 + $0x18] sm:$0xff]
        %v480 = vld [vmem:[%s4 + $0x20] sm:$0xff]
        %v481 = vld [vmem:[%s4 + $0x28] sm:$0xff]
        %v482 = vld [vmem:[%s4 + $0x30] sm:$0xff]
        %v483 = vld [vmem:[%s4 + $0x38] sm:$0xff]
        %485 = vset.pattern.permute.xlu0 0
        %486 = vperm.xlu0 %485, %v476
        %v487 = vpop.permute.xlu0 %486
        %490 = vset.pattern.permute.xlu0 0
        %491 = vperm.xlu0 %490, %v477
        %v492 = vpop.permute.xlu0 %491
        %495 = vset.pattern.permute.xlu0 0
        %496 = vperm.xlu0 %495, %v478
        %v497 = vpop.permute.xlu0 %496
        %500 = vset.pattern.permute.xlu0 0
        %501 = vperm.xlu0 %500, %v479
        %v502 = vpop.permute.xlu0 %501
        %505 = vset.pattern.permute.xlu0 0
        %506 = vperm.xlu0 %505, %v480
        %v507 = vpop.permute.xlu0 %506
        %510 = vset.pattern.permute.xlu0 0
        %511 = vperm.xlu0 %510, %v481
        %v512 = vpop.permute.xlu0 %511
        %515 = vset.pattern.permute.xlu0 0
        %516 = vperm.xlu0 %515, %v482
        %v517 = vpop.permute.xlu0 %516
        %520 = vset.pattern.permute.xlu0 0
        %521 = vperm.xlu0 %520, %v483
        %v522 = vpop.permute.xlu0 %521
        %vm524 = vcmask 523264
        %v526 = vsel %vm524, %v468, 0
        %v529 = vsel %vm524, %v469, 0
        %v532 = vsel %vm524, %v470, 0
        %v535 = vsel %vm524, %v471, 0
        %v538 = vsel %vm524, %v472, 0
        %v541 = vsel %vm524, %v473, 0
        %v544 = vsel %vm524, %v474, 0
        %v547 = vsel %vm524, %v475, 0
        %549 = vmatpush.msra.mxu0 0.0
        %550 = vmatpush.msra.mxu0 0.0
        %551 = vmatpush.msra.mxu0 0.0
        %552 = vmatpush.msra.mxu0 0.0
        %553 = vmatpush.msra.mxu0 0.0
        %554 = vmatpush.msra.mxu0 0.0
        %555 = vmatpush.msra.mxu0 0.0
        %556 = vmatpush.msra.mxu0 0.0
        %557 = vmatpush.msra.mxu0 %v467
        %558 = vmatpush.msra.mxu0 %v466
        %559 = vmatpush.msra.mxu0 %v465
        %560 = vmatpush.msra.mxu0 %v464
        %561 = vmatpush.msra.mxu0 %v463
        %562 = vmatpush.msra.mxu0 %v462
        %563 = vmatpush.msra.mxu0 %v461
        %564 = vmatpush.msra.mxu0 %v460
        %565 = vmatmul.f32.gmra.mxu0 %v526
        %v566 = vpop.f32.mrf.mxu0
        %v567 = vadd.f32 %v487, %v566
        %568 = vmatmul.f32.gmra.mxu0 %v529
        %v569 = vpop.f32.mrf.mxu0
        %v570 = vadd.f32 %v492, %v569
        %571 = vmatmul.f32.gmra.mxu0 %v532
        %v572 = vpop.f32.mrf.mxu0
        %v573 = vadd.f32 %v497, %v572
        %574 = vmatmul.f32.gmra.mxu0 %v535
        %v575 = vpop.f32.mrf.mxu0
        %v576 = vadd.f32 %v502, %v575
        %577 = vmatmul.f32.gmra.mxu0 %v538
        %v578 = vpop.f32.mrf.mxu0
        %v579 = vadd.f32 %v507, %v578
        %580 = vmatmul.f32.gmra.mxu0 %v541
        %v581 = vpop.f32.mrf.mxu0
        %v582 = vadd.f32 %v512, %v581
        %583 = vmatmul.f32.gmra.mxu0 %v544
        %v584 = vpop.f32.mrf.mxu0
        %v585 = vadd.f32 %v517, %v584
        %586 = vmatmul.f32.gmra.mxu0 %v547
        %v587 = vpop.f32.mrf.mxu0
        %v588 = vadd.f32 %v522, %v587
        %589 = vdwg.mxu0
        %v590 = vmax.f32 %v567, 0.0
        %v591 = vmax.f32 %v570, 0.0
        %v592 = vmax.f32 %v573, 0.0
        %v593 = vmax.f32 %v576, 0.0
        %v594 = vmax.f32 %v579, 0.0
        %v595 = vmax.f32 %v582, 0.0
        %v596 = vmax.f32 %v585, 0.0
        %v597 = vmax.f32 %v588, 0.0
        %598 = vst [vmem:[%s239] sm:$0xff] %v590
        %599 = vst [vmem:[%s239 + $0x8] sm:$0xff] %v591
        %600 = vst [vmem:[%s239 + $0x10] sm:$0xff] %v592
        %601 = vst [vmem:[%s239 + $0x18] sm:$0xff] %v593
        %602 = vst [vmem:[%s239 + $0x20] sm:$0xff] %v594
        %603 = vst [vmem:[%s239 + $0x28] sm:$0xff] %v595
        %604 = vst [vmem:[%s239 + $0x30] sm:$0xff] %v596
        %605 = vst [vmem:[%s239 + $0x38] sm:$0xff] %v597
        %s606 = sand.u32 %s153, 1
        %s607 = scalar_lea.sflag [#allocation3], %s606
        %s608 = sand.u32 %s153, 1
        %s609 = smul.addr %s608, 64
        %s610 = scalar_lea.vmem [#allocation2], %s609
        // Predicated region
        $region41: #{spatial_descriptor.1} parent=39 // pred_check
          %p611 = pneg %p163
        $region42: #{spatial_descriptor.1} parent=39 // pred_check_branch
          %613 = sbr.rel (%p611) target = $region44
        $region43: #{spatial_descriptor.1} parent=39 // pred_region
          %615 = vsyncadd %s607, 0
          %s616 = smul.addr %s23, 24
          %s617 = sadd.s32 %s24, %s616
          %s618 = smul.addr %s617, 8
          %s619 = scalar_lea.hbm %s5, %s618
          %s620 = sshll.u32 %s610, 4
          %s621 = int_to_ptr.vmem [resolvable:$true] %s620
          %s622 = sshll.u32 %s619, 4
          %s623 = int_to_ptr.hbm [resolvable:$true] %s622
          %628 = dma.vmem_to_hbm [thread:$0]  %s621, 1024, %s623, %s607, 128, 384, 8
        $region44: #{spatial_descriptor.1} parent=39 // pred_fallthru
          _
      $region40: #{spatial_descriptor.1} parent=5 // pred_fallthru
        _
      %p629 = scmp.le.s32.totalorder 2, %s14
      // Predicated region
      $region45: #{spatial_descriptor.1} parent=5 // pred_check
        %p630 = pneg %p629
      $region46: #{spatial_descriptor.1} parent=5 // pred_check_branch
        %632 = sbr.rel (%p630) target = $region48
      $region47: #{spatial_descriptor.1} parent=5 // pred_region
        %s633 = ssub.s32 %s14, 2
        // Predicated region
        $region49: #{spatial_descriptor.1} parent=47 // pred_check
          %p634 = pneg %p169
        $region50: #{spatial_descriptor.1} parent=47 // pred_check_branch
          %636 = sbr.rel (%p634) target = $region52
        $region51: #{spatial_descriptor.1} parent=47 // pred_region
          %s637 = sand.u32 %s154, 1
          %s638 = scalar_lea.sflag [#allocation3], %s637
          %s639 = sand.u32 %s154, 1
          %s640 = smul.addr %s639, 64
          %s641 = scalar_lea.vmem [#allocation2], %s640
          %643 = dma.done %s638, 1024
        $region52: #{spatial_descriptor.1} parent=47 // pred_fallthru
          _
      $region48: #{spatial_descriptor.1} parent=5 // pred_fallthru
        _
    $region6: #{spatial_descriptor.1} parent=1 // loop_footer
      %s18 = sadd.s32 1, %s14
    $region7: #{spatial_descriptor.1} parent=1 // loop_footer_branch
      %13 = sbr.rel target = $region3
    $region8: #{spatial_descriptor.1} parent=1 // loop_exit
      _
    %644 = vsyncpa [#allocation3], 1
    %s645 = scalar_lea.sflag [#allocation3], 1
    %646 = vsyncpa %s645, 1

</llo_original>
